<compile_context>
chip_gen: v5e
topology: v5e:2x2
jax: 0.10.0
libtpu: 0.0.40
codegen_flags: <defaults>
</compile_context>

<pallas_src>
import jax
import jax.numpy as jnp
from jax import lax
from jax.experimental import pallas as pl
from jax.experimental.pallas import tpu as pltpu


def _make_conv_kernel(batch_block, cin, cout, h, w, kh, kw, pad, relu):
    hw = h * w
    base = pad * w + pad  # offset of pixel (0, 0) inside the flat padded buffer

    def kernel(x_ref, w_ref, o_ref, g_ref, patch_ref):
        """x_ref     : (batch_block, cin, h*w)     flattened NCHW activations
           w_ref     : (cout, kh*kw*cin)           flattened weights, (kh, kw, c) order
           o_ref     : (batch_block, cout, h*w)    transposed, lane-dense output
           g_ref     : (cin, glen)   VMEM scratch  per-channel flat zero-padded image
           patch_ref : (kh*kw*cin, h*w) VMEM scratch  im2col matrix (patches^T)
        """
        # Column-validity masks (static per kw tap). Lane index p is an output pixel;
        # its image column is p % w.  Edge taps must not read the wrapped-around
        # neighbour-row pixel of the flat buffer.
        col = lax.broadcasted_iota(jnp.int32, (1, hw), 1) % w
        masks = []
        for j in range(kw):
            shift = j - pad
            if shift == 0:
                masks.append(None)
            else:
                masks.append((col + shift >= 0) & (col + shift < w))

        # Zero the padded scratch once; only its interior is rewritten per image.
        g_ref[...] = jnp.zeros_like(g_ref)
        wmat = w_ref[...]  # (cout, kh*kw*cin), resident for the whole step

        for b in range(batch_block):  # small static batch loop, one matmul each
            # In-kernel zero padding: drop the image into the interior of g.
            g_ref[:, base:base + hw] = x_ref[b]

            # Build patches^T once: each tap is a contiguous lane slice of the flat
            # padded buffer (all cin channels at once), masked on the edge columns.
            for i in range(kh):
                for j in range(kw):
                    t = i * kw + j
                    start = i * w + j
                    blk = g_ref[:, start:start + hw]          # (cin, hw)
                    if masks[j] is not None:
                        blk = jnp.where(masks[j], blk, 0.0)
                    patch_ref[t * cin:(t + 1) * cin, :] = blk

            # Single MXU matmul: (cout, kh*kw*cin) @ (kh*kw*cin, hw) -> (cout, hw).
            acc = jnp.dot(wmat, patch_ref[...],
                          preferred_element_type=jnp.float32)
            if relu:
                acc = jnp.maximum(acc, 0.0)                   # fused ReLU on f32 acc
            o_ref[b] = acc.astype(o_ref.dtype)                # wide, unmasked store

    return kernel


def basic_conv_forward(x_nchw, w_oihw, *, stride=1, padding=1, dilation=1,
                       groups=1, relu=True, batch_block=None):
    """ReLU(Conv2d(x, w))  — BasicConv default config (bias=False, bn=False, up_size=0)."""
    n, cin, h, w = x_nchw.shape
    cout, cin_w, kh, kw = w_oihw.shape
    # Guard against silent misuse: only the default conv config is implemented.
    assert cin == cin_w and groups == 1, "groups != 1 not supported"
    assert stride == 1 and dilation == 1, "only stride=1, dilation=1 supported"
    assert kh == kw and 2 * padding == kh - 1, "only odd-k 'same' convolutions supported"

    if batch_block is None:
        batch_block = n  # whole batch in one grid step (N is small)
    assert n % batch_block == 0

    hw = h * w
    glen = hw + (kh - 1) * w + (kw - 1)   # flat padded length per channel
    kkc = kh * kw * cin

    # Free metadata reshape (no HBM pass): NCHW -> (N, C, H*W).
    x_flat = x_nchw.reshape(n, cin, hw)
    # Tiny weight flatten (O,C,KH,KW) -> (O, KH*KW*C); row order matches patch rows.
    w_flat = jnp.transpose(w_oihw, (0, 2, 3, 1)).reshape(cout, kkc)

    kernel = _make_conv_kernel(batch_block, cin, cout, h, w, kh, kw, padding, relu)

    out_flat = pl.pallas_call(
        kernel,
        out_shape=jax.ShapeDtypeStruct((n, cout, hw), x_nchw.dtype),
        grid_spec=pltpu.PrefetchScalarGridSpec(
            num_scalar_prefetch=0,
            grid=(n // batch_block,),
            in_specs=[
                pl.BlockSpec((batch_block, cin, hw), lambda i: (i, 0, 0)),
                pl.BlockSpec((cout, kkc), lambda i: (0, 0)),
            ],
            out_specs=pl.BlockSpec((batch_block, cout, hw), lambda i: (i, 0, 0)),
            scratch_shapes=[
                pltpu.VMEM((cin, glen), x_nchw.dtype),   # flat zero-padded image
                pltpu.VMEM((kkc, hw), x_nchw.dtype),     # im2col patches^T
            ],
        ),
        compiler_params=pltpu.CompilerParams(
            dimension_semantics=("parallel",)),
    )(x_flat, w_flat)

    # Free metadata reshape back to NCHW.
    return out_flat.reshape(n, cout, h, w)


if __name__ == "__main__":
    key = jax.random.PRNGKey(0)
    kx, kwt = jax.random.split(key)

    # Shapes consistent with BasicConv(in_planes=4, out_planes=8, kernel_size=3)
    n, cin, h, w = 2, 4, 16, 16
    cout, k = 8, 3

    x = jax.random.normal(kx, (n, cin, h, w), dtype=jnp.float32)
    wgt = jax.random.normal(kwt, (cout, cin, k, k), dtype=jnp.float32) * 0.1

    out = basic_conv_forward(x, wgt, padding=1)
    out = jax.block_until_ready(out)

    # Reference: XLA conv + ReLU.
    ref = lax.conv_general_dilated(
        x, wgt, window_strides=(1, 1), padding=((1, 1), (1, 1)),
        dimension_numbers=("NCHW", "OIHW", "NCHW"))
    ref = jnp.maximum(ref, 0.0)

    assert out.shape == (n, cout, h, w)
    assert jnp.allclose(out, ref, atol=1e-4, rtol=1e-4), \
        float(jnp.max(jnp.abs(out - ref)))

    print("KERNEL_OK")
</pallas_src>

<mosaic_0001>
module attributes {stable_mosaic.version = 11 : i64} {
  func.func @kernel(%arg0: i32, %arg1: memref<2x4x256xf32, #tpu.memory_space<vmem>>, %arg2: memref<8x36xf32, #tpu.memory_space<vmem>>, %arg3: memref<2x8x256xf32, #tpu.memory_space<vmem>>, %arg4: memref<4x290xf32, #tpu.memory_space<vmem>>, %arg5: memref<36x256xf32, #tpu.memory_space<vmem>>) attributes {dimension_semantics = [#tpu.dimension_semantics<parallel>], iteration_bounds = array<i64: 1>, scalar_prefetch = 0 : i64, scratch_operands = 2 : i64, tpu.core_type = #tpu.core_type<tc>, window_params = [{transform_indices = @transform_0, window_bounds = array<i64: 2, 4, 256>}, {pipeline_mode = #tpu.pipeline_mode<synchronous>, transform_indices = @transform_1, window_bounds = array<i64: 8, 36>}, {transform_indices = @transform_2, window_bounds = array<i64: 2, 8, 256>}]} {
    %0 = tpu.iota {dimensions = array<i32: 1>} : vector<1x256xi32>
    %c16_i32 = arith.constant 16 : i32
    %c0_i32 = arith.constant 0 : i32
    %1 = arith.cmpi eq, %c16_i32, %c0_i32 : i32
    %c1_i32 = arith.constant 1 : i32
    %2 = arith.select %1, %c1_i32, %c16_i32 : i32
    %3 = vector.broadcast %2 : i32 to vector<1x256xi32>
    %4 = arith.remsi %0, %3 : vector<1x256xi32>
    %c0_i32_0 = arith.constant 0 : i32
    %5 = vector.broadcast %c0_i32_0 : i32 to vector<1x256xi32>
    %6 = arith.cmpi ne, %4, %5 : vector<1x256xi32>
    %c0_i32_1 = arith.constant 0 : i32
    %7 = vector.broadcast %c0_i32_1 : i32 to vector<1x256xi32>
    %8 = arith.cmpi slt, %4, %7 : vector<1x256xi32>
    %c0_i32_2 = arith.constant 0 : i32
    %9 = arith.cmpi slt, %2, %c0_i32_2 : i32
    %10 = vector.broadcast %9 : i1 to vector<1x256xi1>
    %11 = vector.broadcast %10 : vector<1x256xi1> to vector<1x256xi1>
    %12 = arith.xori %8, %11 : vector<1x256xi1>
    %13 = arith.andi %12, %6 : vector<1x256xi1>
    %14 = vector.broadcast %2 : i32 to vector<1x256xi32>
    %15 = arith.addi %4, %14 : vector<1x256xi32>
    %16 = arith.select %13, %15, %4 : vector<1x256xi1>, vector<1x256xi32>
    %c-1_i32 = arith.constant -1 : i32
    %17 = vector.broadcast %c-1_i32 : i32 to vector<1x256xi32>
    %18 = arith.addi %16, %17 : vector<1x256xi32>
    %c0_i32_3 = arith.constant 0 : i32
    %19 = vector.broadcast %c0_i32_3 : i32 to vector<1x256xi32>
    %20 = arith.cmpi sge, %18, %19 : vector<1x256xi32>
    %c-1_i32_4 = arith.constant -1 : i32
    %21 = vector.broadcast %c-1_i32_4 : i32 to vector<1x256xi32>
    %22 = arith.addi %16, %21 : vector<1x256xi32>
    %c16_i32_5 = arith.constant 16 : i32
    %23 = vector.broadcast %c16_i32_5 : i32 to vector<1x256xi32>
    %24 = arith.cmpi slt, %22, %23 : vector<1x256xi32>
    %25 = arith.andi %20, %24 : vector<1x256xi1>
    %c1_i32_6 = arith.constant 1 : i32
    %26 = vector.broadcast %c1_i32_6 : i32 to vector<1x256xi32>
    %27 = arith.addi %16, %26 : vector<1x256xi32>
    %c0_i32_7 = arith.constant 0 : i32
    %28 = vector.broadcast %c0_i32_7 : i32 to vector<1x256xi32>
    %29 = arith.cmpi sge, %27, %28 : vector<1x256xi32>
    %c1_i32_8 = arith.constant 1 : i32
    %30 = vector.broadcast %c1_i32_8 : i32 to vector<1x256xi32>
    %31 = arith.addi %16, %30 : vector<1x256xi32>
    %c16_i32_9 = arith.constant 16 : i32
    %32 = vector.broadcast %c16_i32_9 : i32 to vector<1x256xi32>
    %33 = arith.cmpi slt, %31, %32 : vector<1x256xi32>
    %34 = arith.andi %29, %33 : vector<1x256xi1>
    %cst = arith.constant 0.000000e+00 : f32
    %35 = vector.broadcast %cst : f32 to vector<4x290xf32>
    %c0 = arith.constant 0 : index
    %c0_10 = arith.constant 0 : index
    %36 = vector.load %arg4[%c0, %c0_10] : memref<4x290xf32, #tpu.memory_space<vmem>>, vector<4x290xf32>
    tpu.vector_store %arg4[%c0, %c0_10], %35 {strides = array<i32>} : memref<4x290xf32, #tpu.memory_space<vmem>>, vector<4x290xf32>,
    %c0_11 = arith.constant 0 : index
    %c0_12 = arith.constant 0 : index
    %37 = vector.load %arg2[%c0_11, %c0_12] : memref<8x36xf32, #tpu.memory_space<vmem>>, vector<8x36xf32>
    %c0_13 = arith.constant 0 : index
    %c0_14 = arith.constant 0 : index
    %c0_15 = arith.constant 0 : index
    %38 = vector.load %arg1[%c0_13, %c0_14, %c0_15] : memref<2x4x256xf32, #tpu.memory_space<vmem>>, vector<1x4x256xf32>
    %39 = vector.shape_cast %38 : vector<1x4x256xf32> to vector<4x256xf32>
    %c0_16 = arith.constant 0 : index
    %c17 = arith.constant 17 : index
    %40 = vector.load %arg4[%c0_16, %c17] : memref<4x290xf32, #tpu.memory_space<vmem>>, vector<4x256xf32>
    tpu.vector_store %arg4[%c0_16, %c17], %39 {strides = array<i32>} : memref<4x290xf32, #tpu.memory_space<vmem>>, vector<4x256xf32>,
    %c0_17 = arith.constant 0 : index
    %c0_18 = arith.constant 0 : index
    %41 = vector.load %arg4[%c0_17, %c0_18] : memref<4x290xf32, #tpu.memory_space<vmem>>, vector<4x256xf32>
    %cst_19 = arith.constant 0.000000e+00 : f32
    %42 = vector.shape_cast %25 : vector<1x256xi1> to vector<1x256xi1>
    %43 = vector.broadcast %42 : vector<1x256xi1> to vector<4x256xi1>
    %44 = vector.broadcast %cst_19 : f32 to vector<4x256xf32>
    %45 = arith.select %43, %41, %44 : vector<4x256xi1>, vector<4x256xf32>
    %c0_20 = arith.constant 0 : index
    %c0_21 = arith.constant 0 : index
    %46 = vector.load %arg5[%c0_20, %c0_21] : memref<36x256xf32, #tpu.memory_space<vmem>>, vector<4x256xf32>
    tpu.vector_store %arg5[%c0_20, %c0_21], %45 {strides = array<i32>} : memref<36x256xf32, #tpu.memory_space<vmem>>, vector<4x256xf32>,
    %c0_22 = arith.constant 0 : index
    %c1 = arith.constant 1 : index
    %47 = vector.load %arg4[%c0_22, %c1] : memref<4x290xf32, #tpu.memory_space<vmem>>, vector<4x256xf32>
    %c4 = arith.constant 4 : index
    %c0_23 = arith.constant 0 : index
    %48 = vector.load %arg5[%c4, %c0_23] : memref<36x256xf32, #tpu.memory_space<vmem>>, vector<4x256xf32>
    tpu.vector_store %arg5[%c4, %c0_23], %47 {strides = array<i32>} : memref<36x256xf32, #tpu.memory_space<vmem>>, vector<4x256xf32>,
    %c0_24 = arith.constant 0 : index
    %c2 = arith.constant 2 : index
    %49 = vector.load %arg4[%c0_24, %c2] : memref<4x290xf32, #tpu.memory_space<vmem>>, vector<4x256xf32>
    %cst_25 = arith.constant 0.000000e+00 : f32
    %50 = vector.shape_cast %34 : vector<1x256xi1> to vector<1x256xi1>
    %51 = vector.broadcast %50 : vector<1x256xi1> to vector<4x256xi1>
    %52 = vector.broadcast %cst_25 : f32 to vector<4x256xf32>
    %53 = arith.select %51, %49, %52 : vector<4x256xi1>, vector<4x256xf32>
    %c8 = arith.constant 8 : index
    %c0_26 = arith.constant 0 : index
    %54 = vector.load %arg5[%c8, %c0_26] : memref<36x256xf32, #tpu.memory_space<vmem>>, vector<4x256xf32>
    tpu.vector_store %arg5[%c8, %c0_26], %53 {strides = array<i32>} : memref<36x256xf32, #tpu.memory_space<vmem>>, vector<4x256xf32>,
    %c0_27 = arith.constant 0 : index
    %c16 = arith.constant 16 : index
    %55 = vector.load %arg4[%c0_27, %c16] : memref<4x290xf32, #tpu.memory_space<vmem>>, vector<4x256xf32>
    %cst_28 = arith.constant 0.000000e+00 : f32
    %56 = vector.shape_cast %25 : vector<1x256xi1> to vector<1x256xi1>
    %57 = vector.broadcast %56 : vector<1x256xi1> to vector<4x256xi1>
    %58 = vector.broadcast %cst_28 : f32 to vector<4x256xf32>
    %59 = arith.select %57, %55, %58 : vector<4x256xi1>, vector<4x256xf32>
    %c12 = arith.constant 12 : index
    %c0_29 = arith.constant 0 : index
    %60 = vector.load %arg5[%c12, %c0_29] : memref<36x256xf32, #tpu.memory_space<vmem>>, vector<4x256xf32>
    tpu.vector_store %arg5[%c12, %c0_29], %59 {strides = array<i32>} : memref<36x256xf32, #tpu.memory_space<vmem>>, vector<4x256xf32>,
    %c0_30 = arith.constant 0 : index
    %c17_31 = arith.constant 17 : index
    %61 = vector.load %arg4[%c0_30, %c17_31] : memref<4x290xf32, #tpu.memory_space<vmem>>, vector<4x256xf32>
    %c16_32 = arith.constant 16 : index
    %c0_33 = arith.constant 0 : index
    %62 = vector.load %arg5[%c16_32, %c0_33] : memref<36x256xf32, #tpu.memory_space<vmem>>, vector<4x256xf32>
    tpu.vector_store %arg5[%c16_32, %c0_33], %61 {strides = array<i32>} : memref<36x256xf32, #tpu.memory_space<vmem>>, vector<4x256xf32>,
    %c0_34 = arith.constant 0 : index
    %c18 = arith.constant 18 : index
    %63 = vector.load %arg4[%c0_34, %c18] : memref<4x290xf32, #tpu.memory_space<vmem>>, vector<4x256xf32>
    %cst_35 = arith.constant 0.000000e+00 : f32
    %64 = vector.shape_cast %34 : vector<1x256xi1> to vector<1x256xi1>
    %65 = vector.broadcast %64 : vector<1x256xi1> to vector<4x256xi1>
    %66 = vector.broadcast %cst_35 : f32 to vector<4x256xf32>
    %67 = arith.select %65, %63, %66 : vector<4x256xi1>, vector<4x256xf32>
    %c20 = arith.constant 20 : index
    %c0_36 = arith.constant 0 : index
    %68 = vector.load %arg5[%c20, %c0_36] : memref<36x256xf32, #tpu.memory_space<vmem>>, vector<4x256xf32>
    tpu.vector_store %arg5[%c20, %c0_36], %67 {strides = array<i32>} : memref<36x256xf32, #tpu.memory_space<vmem>>, vector<4x256xf32>,
    %c0_37 = arith.constant 0 : index
    %c32 = arith.constant 32 : index
    %69 = vector.load %arg4[%c0_37, %c32] : memref<4x290xf32, #tpu.memory_space<vmem>>, vector<4x256xf32>
    %cst_38 = arith.constant 0.000000e+00 : f32
    %70 = vector.shape_cast %25 : vector<1x256xi1> to vector<1x256xi1>
    %71 = vector.broadcast %70 : vector<1x256xi1> to vector<4x256xi1>
    %72 = vector.broadcast %cst_38 : f32 to vector<4x256xf32>
    %73 = arith.select %71, %69, %72 : vector<4x256xi1>, vector<4x256xf32>
    %c24 = arith.constant 24 : index
    %c0_39 = arith.constant 0 : index
    %74 = vector.load %arg5[%c24, %c0_39] : memref<36x256xf32, #tpu.memory_space<vmem>>, vector<4x256xf32>
    tpu.vector_store %arg5[%c24, %c0_39], %73 {strides = array<i32>} : memref<36x256xf32, #tpu.memory_space<vmem>>, vector<4x256xf32>,
    %c0_40 = arith.constant 0 : index
    %c33 = arith.constant 33 : index
    %75 = vector.load %arg4[%c0_40, %c33] : memref<4x290xf32, #tpu.memory_space<vmem>>, vector<4x256xf32>
    %c28 = arith.constant 28 : index
    %c0_41 = arith.constant 0 : index
    %76 = vector.load %arg5[%c28, %c0_41] : memref<36x256xf32, #tpu.memory_space<vmem>>, vector<4x256xf32>
    tpu.vector_store %arg5[%c28, %c0_41], %75 {strides = array<i32>} : memref<36x256xf32, #tpu.memory_space<vmem>>, vector<4x256xf32>,
    %c0_42 = arith.constant 0 : index
    %c34 = arith.constant 34 : index
    %77 = vector.load %arg4[%c0_42, %c34] : memref<4x290xf32, #tpu.memory_space<vmem>>, vector<4x256xf32>
    %cst_43 = arith.constant 0.000000e+00 : f32
    %78 = vector.shape_cast %34 : vector<1x256xi1> to vector<1x256xi1>
    %79 = vector.broadcast %78 : vector<1x256xi1> to vector<4x256xi1>
    %80 = vector.broadcast %cst_43 : f32 to vector<4x256xf32>
    %81 = arith.select %79, %77, %80 : vector<4x256xi1>, vector<4x256xf32>
    %c32_44 = arith.constant 32 : index
    %c0_45 = arith.constant 0 : index
    %82 = vector.load %arg5[%c32_44, %c0_45] : memref<36x256xf32, #tpu.memory_space<vmem>>, vector<4x256xf32>
    tpu.vector_store %arg5[%c32_44, %c0_45], %81 {strides = array<i32>} : memref<36x256xf32, #tpu.memory_space<vmem>>, vector<4x256xf32>,
    %c0_46 = arith.constant 0 : index
    %c0_47 = arith.constant 0 : index
    %83 = vector.load %arg5[%c0_46, %c0_47] : memref<36x256xf32, #tpu.memory_space<vmem>>, vector<36x256xf32>
    %cst_48 = arith.constant dense<0.000000e+00> : vector<8x256xf32>
    %84 = tpu.matmul %37, %83, %cst_48 {dimension_numbers = #tpu.dot_dimension_numbers<[1], [0], [0], [1], [0, 0, 1, 1], [], []>} : vector<8x36xf32>, vector<36x256xf32>, vector<8x256xf32> -> vector<8x256xf32>
    %cst_49 = arith.constant 0.000000e+00 : f32
    %85 = vector.broadcast %cst_49 : f32 to vector<8x256xf32>
    %86 = arith.maximumf %84, %85 : vector<8x256xf32>
    %c0_50 = arith.constant 0 : index
    %c0_51 = arith.constant 0 : index
    %c0_52 = arith.constant 0 : index
    %87 = vector.load %arg3[%c0_50, %c0_51, %c0_52] : memref<2x8x256xf32, #tpu.memory_space<vmem>>, vector<1x8x256xf32>
    %88 = vector.shape_cast %87 : vector<1x8x256xf32> to vector<8x256xf32>
    %89 = vector.shape_cast %86 : vector<8x256xf32> to vector<1x8x256xf32>
    tpu.vector_store %arg3[%c0_50, %c0_51, %c0_52], %89 {strides = array<i32>} : memref<2x8x256xf32, #tpu.memory_space<vmem>>, vector<1x8x256xf32>,
    %c1_53 = arith.constant 1 : index
    %c0_54 = arith.constant 0 : index
    %c0_55 = arith.constant 0 : index
    %90 = vector.load %arg1[%c1_53, %c0_54, %c0_55] : memref<2x4x256xf32, #tpu.memory_space<vmem>>, vector<1x4x256xf32>
    %91 = vector.shape_cast %90 : vector<1x4x256xf32> to vector<4x256xf32>
    %c0_56 = arith.constant 0 : index
    %c17_57 = arith.constant 17 : index
    %92 = vector.load %arg4[%c0_56, %c17_57] : memref<4x290xf32, #tpu.memory_space<vmem>>, vector<4x256xf32>
    tpu.vector_store %arg4[%c0_56, %c17_57], %91 {strides = array<i32>} : memref<4x290xf32, #tpu.memory_space<vmem>>, vector<4x256xf32>,
    %c0_58 = arith.constant 0 : index
    %c0_59 = arith.constant 0 : index
    %93 = vector.load %arg4[%c0_58, %c0_59] : memref<4x290xf32, #tpu.memory_space<vmem>>, vector<4x256xf32>
    %cst_60 = arith.constant 0.000000e+00 : f32
    %94 = vector.shape_cast %25 : vector<1x256xi1> to vector<1x256xi1>
    %95 = vector.broadcast %94 : vector<1x256xi1> to vector<4x256xi1>
    %96 = vector.broadcast %cst_60 : f32 to vector<4x256xf32>
    %97 = arith.select %95, %93, %96 : vector<4x256xi1>, vector<4x256xf32>
    %c0_61 = arith.constant 0 : index
    %c0_62 = arith.constant 0 : index
    %98 = vector.load %arg5[%c0_61, %c0_62] : memref<36x256xf32, #tpu.memory_space<vmem>>, vector<4x256xf32>
    tpu.vector_store %arg5[%c0_61, %c0_62], %97 {strides = array<i32>} : memref<36x256xf32, #tpu.memory_space<vmem>>, vector<4x256xf32>,
    %c0_63 = arith.constant 0 : index
    %c1_64 = arith.constant 1 : index
    %99 = vector.load %arg4[%c0_63, %c1_64] : memref<4x290xf32, #tpu.memory_space<vmem>>, vector<4x256xf32>
    %c4_65 = arith.constant 4 : index
    %c0_66 = arith.constant 0 : index
    %100 = vector.load %arg5[%c4_65, %c0_66] : memref<36x256xf32, #tpu.memory_space<vmem>>, vector<4x256xf32>
    tpu.vector_store %arg5[%c4_65, %c0_66], %99 {strides = array<i32>} : memref<36x256xf32, #tpu.memory_space<vmem>>, vector<4x256xf32>,
    %c0_67 = arith.constant 0 : index
    %c2_68 = arith.constant 2 : index
    %101 = vector.load %arg4[%c0_67, %c2_68] : memref<4x290xf32, #tpu.memory_space<vmem>>, vector<4x256xf32>
    %cst_69 = arith.constant 0.000000e+00 : f32
    %102 = vector.shape_cast %34 : vector<1x256xi1> to vector<1x256xi1>
    %103 = vector.broadcast %102 : vector<1x256xi1> to vector<4x256xi1>
    %104 = vector.broadcast %cst_69 : f32 to vector<4x256xf32>
    %105 = arith.select %103, %101, %104 : vector<4x256xi1>, vector<4x256xf32>
    %c8_70 = arith.constant 8 : index
    %c0_71 = arith.constant 0 : index
    %106 = vector.load %arg5[%c8_70, %c0_71] : memref<36x256xf32, #tpu.memory_space<vmem>>, vector<4x256xf32>
    tpu.vector_store %arg5[%c8_70, %c0_71], %105 {strides = array<i32>} : memref<36x256xf32, #tpu.memory_space<vmem>>, vector<4x256xf32>,
    %c0_72 = arith.constant 0 : index
    %c16_73 = arith.constant 16 : index
    %107 = vector.load %arg4[%c0_72, %c16_73] : memref<4x290xf32, #tpu.memory_space<vmem>>, vector<4x256xf32>
    %cst_74 = arith.constant 0.000000e+00 : f32
    %108 = vector.shape_cast %25 : vector<1x256xi1> to vector<1x256xi1>
    %109 = vector.broadcast %108 : vector<1x256xi1> to vector<4x256xi1>
    %110 = vector.broadcast %cst_74 : f32 to vector<4x256xf32>
    %111 = arith.select %109, %107, %110 : vector<4x256xi1>, vector<4x256xf32>
    %c12_75 = arith.constant 12 : index
    %c0_76 = arith.constant 0 : index
    %112 = vector.load %arg5[%c12_75, %c0_76] : memref<36x256xf32, #tpu.memory_space<vmem>>, vector<4x256xf32>
    tpu.vector_store %arg5[%c12_75, %c0_76], %111 {strides = array<i32>} : memref<36x256xf32, #tpu.memory_space<vmem>>, vector<4x256xf32>,
    %c0_77 = arith.constant 0 : index
    %c17_78 = arith.constant 17 : index
    %113 = vector.load %arg4[%c0_77, %c17_78] : memref<4x290xf32, #tpu.memory_space<vmem>>, vector<4x256xf32>
    %c16_79 = arith.constant 16 : index
    %c0_80 = arith.constant 0 : index
    %114 = vector.load %arg5[%c16_79, %c0_80] : memref<36x256xf32, #tpu.memory_space<vmem>>, vector<4x256xf32>
    tpu.vector_store %arg5[%c16_79, %c0_80], %113 {strides = array<i32>} : memref<36x256xf32, #tpu.memory_space<vmem>>, vector<4x256xf32>,
    %c0_81 = arith.constant 0 : index
    %c18_82 = arith.constant 18 : index
    %115 = vector.load %arg4[%c0_81, %c18_82] : memref<4x290xf32, #tpu.memory_space<vmem>>, vector<4x256xf32>
    %cst_83 = arith.constant 0.000000e+00 : f32
    %116 = vector.shape_cast %34 : vector<1x256xi1> to vector<1x256xi1>
    %117 = vector.broadcast %116 : vector<1x256xi1> to vector<4x256xi1>
    %118 = vector.broadcast %cst_83 : f32 to vector<4x256xf32>
    %119 = arith.select %117, %115, %118 : vector<4x256xi1>, vector<4x256xf32>
    %c20_84 = arith.constant 20 : index
    %c0_85 = arith.constant 0 : index
    %120 = vector.load %arg5[%c20_84, %c0_85] : memref<36x256xf32, #tpu.memory_space<vmem>>, vector<4x256xf32>
    tpu.vector_store %arg5[%c20_84, %c0_85], %119 {strides = array<i32>} : memref<36x256xf32, #tpu.memory_space<vmem>>, vector<4x256xf32>,
    %c0_86 = arith.constant 0 : index
    %c32_87 = arith.constant 32 : index
    %121 = vector.load %arg4[%c0_86, %c32_87] : memref<4x290xf32, #tpu.memory_space<vmem>>, vector<4x256xf32>
    %cst_88 = arith.constant 0.000000e+00 : f32
    %122 = vector.shape_cast %25 : vector<1x256xi1> to vector<1x256xi1>
    %123 = vector.broadcast %122 : vector<1x256xi1> to vector<4x256xi1>
    %124 = vector.broadcast %cst_88 : f32 to vector<4x256xf32>
    %125 = arith.select %123, %121, %124 : vector<4x256xi1>, vector<4x256xf32>
    %c24_89 = arith.constant 24 : index
    %c0_90 = arith.constant 0 : index
    %126 = vector.load %arg5[%c24_89, %c0_90] : memref<36x256xf32, #tpu.memory_space<vmem>>, vector<4x256xf32>
    tpu.vector_store %arg5[%c24_89, %c0_90], %125 {strides = array<i32>} : memref<36x256xf32, #tpu.memory_space<vmem>>, vector<4x256xf32>,
    %c0_91 = arith.constant 0 : index
    %c33_92 = arith.constant 33 : index
    %127 = vector.load %arg4[%c0_91, %c33_92] : memref<4x290xf32, #tpu.memory_space<vmem>>, vector<4x256xf32>
    %c28_93 = arith.constant 28 : index
    %c0_94 = arith.constant 0 : index
    %128 = vector.load %arg5[%c28_93, %c0_94] : memref<36x256xf32, #tpu.memory_space<vmem>>, vector<4x256xf32>
    tpu.vector_store %arg5[%c28_93, %c0_94], %127 {strides = array<i32>} : memref<36x256xf32, #tpu.memory_space<vmem>>, vector<4x256xf32>,
    %c0_95 = arith.constant 0 : index
    %c34_96 = arith.constant 34 : index
    %129 = vector.load %arg4[%c0_95, %c34_96] : memref<4x290xf32, #tpu.memory_space<vmem>>, vector<4x256xf32>
    %cst_97 = arith.constant 0.000000e+00 : f32
    %130 = vector.shape_cast %34 : vector<1x256xi1> to vector<1x256xi1>
    %131 = vector.broadcast %130 : vector<1x256xi1> to vector<4x256xi1>
    %132 = vector.broadcast %cst_97 : f32 to vector<4x256xf32>
    %133 = arith.select %131, %129, %132 : vector<4x256xi1>, vector<4x256xf32>
    %c32_98 = arith.constant 32 : index
    %c0_99 = arith.constant 0 : index
    %134 = vector.load %arg5[%c32_98, %c0_99] : memref<36x256xf32, #tpu.memory_space<vmem>>, vector<4x256xf32>
    tpu.vector_store %arg5[%c32_98, %c0_99], %133 {strides = array<i32>} : memref<36x256xf32, #tpu.memory_space<vmem>>, vector<4x256xf32>,
    %c0_100 = arith.constant 0 : index
    %c0_101 = arith.constant 0 : index
    %135 = vector.load %arg5[%c0_100, %c0_101] : memref<36x256xf32, #tpu.memory_space<vmem>>, vector<36x256xf32>
    %cst_102 = arith.constant dense<0.000000e+00> : vector<8x256xf32>
    %136 = tpu.matmul %37, %135, %cst_102 {dimension_numbers = #tpu.dot_dimension_numbers<[1], [0], [0], [1], [0, 0, 1, 1], [], []>} : vector<8x36xf32>, vector<36x256xf32>, vector<8x256xf32> -> vector<8x256xf32>
    %cst_103 = arith.constant 0.000000e+00 : f32
    %137 = vector.broadcast %cst_103 : f32 to vector<8x256xf32>
    %138 = arith.maximumf %136, %137 : vector<8x256xf32>
    %c1_104 = arith.constant 1 : index
    %c0_105 = arith.constant 0 : index
    %c0_106 = arith.constant 0 : index
    %139 = vector.load %arg3[%c1_104, %c0_105, %c0_106] : memref<2x8x256xf32, #tpu.memory_space<vmem>>, vector<1x8x256xf32>
    %140 = vector.shape_cast %139 : vector<1x8x256xf32> to vector<8x256xf32>
    %141 = vector.shape_cast %138 : vector<8x256xf32> to vector<1x8x256xf32>
    tpu.vector_store %arg3[%c1_104, %c0_105, %c0_106], %141 {strides = array<i32>} : memref<2x8x256xf32, #tpu.memory_space<vmem>>, vector<1x8x256xf32>,
    return
  }
  func.func @transform_0(%arg0: i32) -> (i32, i32, i32) {
    %c0_i32 = arith.constant 0 : i32
    %c0_i32_0 = arith.constant 0 : i32
    %c0_i32_1 = arith.constant 0 : i32
    return %arg0, %c0_i32, %c0_i32_0 : i32, i32, i32
  }
  func.func @transform_1(%arg0: i32) -> (i32, i32) {
    %c0_i32 = arith.constant 0 : i32
    %c0_i32_0 = arith.constant 0 : i32
    %c0_i32_1 = arith.constant 0 : i32
    return %c0_i32, %c0_i32_0 : i32, i32
  }
  func.func @transform_2(%arg0: i32) -> (i32, i32, i32) {
    %c0_i32 = arith.constant 0 : i32
    %c0_i32_0 = arith.constant 0 : i32
    %c0_i32_1 = arith.constant 0 : i32
    return %arg0, %c0_i32, %c0_i32_0 : i32, i32, i32
  }
}

</mosaic_0001>

<llo_original>
// kernel: tpu_custom_call.1
$region0: #{tpu_custom_call.1}
  #allocation0 [shape = 'u32[]', space=smem, size = 0x4, offset = 0x4, fixed_abs, tag = 'smem constant byte address 0x4 - core index']
  #allocation1 [shape = 'u32[72,128]{1,0:T(1,128)}', space=vmem, size = 0x9000, scoped, tag = 'internal scratch']
  #allocation2 [shape = 'f32[4,290]{1,0:T(4,128)}', space=vmem, size = 0x1800, scoped, tag = 'scratch operand']
  #allocation3 [shape = 'f32[36,256]{1,0:T(8,128)}', space=vmem, size = 0xa000, scoped, tag = 'scratch operand']
  %s0 = inlined_call_operand.hbm [shape: f32[2,4,256], index: 0, kind: input, shape index: {}]
  %s1 = inlined_call_operand.hbm [shape: f32[8,36], index: 1, kind: input, shape index: {}]
  %s2 = inlined_call_operand.hbm [shape: f32[2,8,256], index: 2, kind: output, shape index: {}]
  %s3 = sld [smem:[#allocation0]]
  $region26: #{tpu_custom_call.1} parent=0
    _
  %s5 = ssub.s32 1, %s3
  %s6 = scalar_select 0, %s5, %s3
  $region1: #{tpu_custom_call.1} parent=0
    #allocation4 [shape = 'u8[8192]{0}', space=vmem, size = 0x2000, scoped, tag = 'input window, operand 0, single buffered']
    #allocation5 [shape = 's32[1]{0}', space=sflag, size = 0x4, scoped, tag = 'scoped memory for tpu_custom_call.1']
    #allocation6 [shape = 's32[1]{0}', space=sflag, size = 0x4, scoped, tag = 'scoped memory for tpu_custom_call.1']
    #allocation7 [shape = 'u8[4096]{0}', space=vmem, size = 0x1000, scoped, tag = 'input window, operand 1, single buffered']
    #allocation8 [shape = 's32[1]{0}', space=sflag, size = 0x4, scoped, tag = 'scoped memory for tpu_custom_call.1']
    #allocation9 [shape = 'u8[16384]{0}', space=vmem, size = 0x4000, scoped, tag = 'output window, operand 0, single buffered']
    %7 = vsyncpa [#allocation5], 0
    %8 = vsyncpa [#allocation8], 0
    %9 = vsyncpa [#allocation6], 0
    // Predicated region
    $region2: #{tpu_custom_call.1} parent=1 // pred_check
      _
    $region3: #{tpu_custom_call.1} parent=1 // pred_check_branch
      %11 = sbr.rel (0) target = $region5
    $region4: #{tpu_custom_call.1} parent=1 // pred_region
      %13 = vsyncadd [#allocation5], 0
      %s14 = sshll.u32 %s0, 4
      %s15 = int_to_ptr.hbm [resolvable:$true] %s14
      %s16 = sshll.u32 [#allocation4], 4
      %s17 = int_to_ptr.vmem [resolvable:$true] %s16
      %22 = dma.hbm_to_vmem [thread:$0]  %s15, 256, %s17, [#allocation5], 128, 128, 8
    $region5: #{tpu_custom_call.1} parent=1 // pred_fallthru
      _
    // Predicated region
    $region6: #{tpu_custom_call.1} parent=1 // pred_check
      _
    $region7: #{tpu_custom_call.1} parent=1 // pred_check_branch
      %24 = sbr.rel (0) target = $region9
    $region8: #{tpu_custom_call.1} parent=1 // pred_region
      %26 = vsyncadd [#allocation8], 0
      %s28 = sshll.u32 %s1, 4
      %s29 = int_to_ptr.hbm [resolvable:$true] %s28
      %s30 = sshll.u32 [#allocation7], 4
      %s31 = int_to_ptr.vmem [resolvable:$true] %s30
      %33 = dma.hbm_to_vmem [thread:$0]  %s29, 128, %s31, [#allocation8]
    $region9: #{tpu_custom_call.1} parent=1 // pred_fallthru
      _
    // Predicated region
    $region10: #{tpu_custom_call.1} parent=1 // pred_check
      _
    $region11: #{tpu_custom_call.1} parent=1 // pred_check_branch
      %35 = sbr.rel (0) target = $region13
    $region12: #{tpu_custom_call.1} parent=1 // pred_region
      %37 = dma.done [#allocation5], 256
    $region13: #{tpu_custom_call.1} parent=1 // pred_fallthru
      _
    // Predicated region
    $region14: #{tpu_custom_call.1} parent=1 // pred_check
      _
    $region15: #{tpu_custom_call.1} parent=1 // pred_check_branch
      %39 = sbr.rel (0) target = $region17
    $region16: #{tpu_custom_call.1} parent=1 // pred_region
      %41 = dma.done [#allocation8], 128
    $region17: #{tpu_custom_call.1} parent=1 // pred_fallthru
      _
    %v42 = vlaneseq
    %v43 = vand.u32 %v42, 127
    %v44 = vadd.s32 %v43, 128
    %vm45 = vcmp.lt.s32.totalorder %v43, 0
    %v46 = vsub.s32 0, %v43
    %v47 = vsel %vm45, %v46, %v43
    %v48 = vshrl.u32 %v47, 4
    %v49 = vand.u32 %v47, 15
    %v50 = vsub.s32 0, %v49
    %v51 = vsel %vm45, %v50, %v49
    %vm52 = vcmp.lt.s32.totalorder %v44, 0
    %v53 = vsub.s32 0, %v44
    %v54 = vsel %vm52, %v53, %v44
    %v55 = vshrl.u32 %v54, 4
    %v56 = vand.u32 %v54, 15
    %v57 = vsub.s32 0, %v56
    %v58 = vsel %vm52, %v57, %v56
    %vm59 = vcmp.ne.s32.totalorder %v51, 0
    %vm60 = vcmp.ne.s32.totalorder %v58, 0
    %vm61 = vcmp.lt.s32.totalorder %v51, 0
    %vm62 = vcmp.lt.s32.totalorder %v58, 0
    %vm63 = vmand %vm61, %vm59
    %vm64 = vmand %vm62, %vm60
    %v65 = vadd.s32 %v51, 16
    %v66 = vadd.s32 %v58, 16
    %v67 = vsel %vm63, %v65, %v51
    %v68 = vsel %vm64, %v66, %v58
    %v69 = vadd.s32 %v67, 4294967295
    %v70 = vadd.s32 %v68, 4294967295
    %vm71 = vcmp.ge.s32.totalorder %v69, 0
    %vm72 = vcmp.ge.s32.totalorder %v70, 0
    %vm73 = vcmp.lt.s32.totalorder %v69, 16
    %vm74 = vcmp.lt.s32.totalorder %v70, 16
    %vm75 = vmand %vm71, %vm73
    %vm76 = vmand %vm72, %vm74
    %v77 = vadd.s32 %v67, 1
    %v78 = vadd.s32 %v68, 1
    %vm79 = vcmp.ge.s32.totalorder %v77, 0
    %vm80 = vcmp.ge.s32.totalorder %v78, 0
    %vm81 = vcmp.lt.s32.totalorder %v77, 16
    %vm82 = vcmp.lt.s32.totalorder %v78, 16
    %vm83 = vmand %vm79, %vm81
    %vm84 = vmand %vm80, %vm82
    %85 = vst [vmem:[#allocation2] sm:$0xff] 0.0
    %vm86 = vcmask 273408
    %87 = vst.msk [vmem:[#allocation2 + $0x8] sm:$0xf] %vm86, 0.0
    %v88 = vld [vmem:[#allocation7] sm:$0xff]
    %v89 = vld [vmem:[#allocation4] sm:$0xff]
    %91 = vrot.lane.b32.xlu0 %v89, 17
    %v92 = vpop.permute.xlu0 %91
    %v93 = vrot.slane %v92, 4
    %vm94 = vcmask 138240
    %v95 = vsel %vm94, %v93, %v92
    %vm98 = vcmask 1043592
    %vm99 = vcmask 1047556
    %vm100 = vmor %vm99, %vm98
    %101 = vst.msk [vmem:[#allocation2] sm:$0xff] %vm100, %v95
    %vm102 = vcmask 134144
    %103 = vst.msk [vmem:[#allocation2 + $0x8] sm:$0xf] %vm102, %v93
    %v104 = vld [vmem:[#allocation2] sm:$0xff]
    %v105 = vsel %vm75, 1, 0
    %v106 = vsel %vm76, 1, 0
    %vm107 = vcmp.eq.s32.totalorder %v105, 1
    %vm108 = vcmp.eq.s32.totalorder %v106, 1
    %110 = vst [vmem:[#allocation1] ss:$2 sm:$0xff] %v104
    %v111 = vld.sshfl [vmem:[#allocation1] sm:$0xff pattern:$0x75316420]
    %v112 = vld.sshfl [vmem:[#allocation1 + $0x8] sm:$0xff pattern:$0x75316420]
    %v115 = vsel %vm107, %v111, 0.0
    %v116 = vsel %vm108, %v112, 0.0
    %117 = vst [vmem:[#allocation3] sm:$0xf] %v115
    %118 = vst [vmem:[#allocation3 + $0x8] sm:$0xf] %v116
    %v119 = vld [vmem:[#allocation2] sm:$0xff]
    %v120 = vld [vmem:[#allocation2 + $0x8] sm:$0xf]
    %s123 = scalar_lea.vmem [#allocation1], 1
    %124 = vst [vmem:[%s123] ss:$2 sm:$0xff] %v119
    %s125 = scalar_lea.vmem [#allocation1], 17
    %126 = vst [vmem:[%s125] ss:$2 sm:$0xff] %v120
    %v127 = vld.sshfl [vmem:[#allocation1] sm:$0xff pattern:$0x75316420]
    %v128 = vld.sshfl [vmem:[#allocation1 + $0x8] sm:$0xff pattern:$0x75316420]
    %v129 = vld.sshfl [vmem:[#allocation1 + $0x10] sm:$0xff pattern:$0x75316420]
    %130 = vrot.lane.b32.xlu0 %v127, 127
    %v131 = vpop.permute.xlu0 %130
    %132 = vrot.lane.b32.xlu0 %v128, 127
    %v133 = vpop.permute.xlu0 %132
    %134 = vrot.lane.b32.xlu0 %v129, 127
    %v135 = vpop.permute.xlu0 %134
    %vm136 = vcmask 1039360
    %v137 = vsel %vm136, %v131, %v133
    %v138 = vsel %vm136, %v133, %v135
    %141 = vst [vmem:[#allocation3] sm:$0xf0] %v137
    %142 = vst [vmem:[#allocation3 + $0x8] sm:$0xf0] %v138
    %v143 = vld [vmem:[#allocation2] sm:$0xff]
    %v144 = vld [vmem:[#allocation2 + $0x8] sm:$0xf]
    %v145 = vsel %vm83, 1, 0
    %v146 = vsel %vm84, 1, 0
    %vm147 = vcmp.eq.s32.totalorder %v145, 1
    %vm148 = vcmp.eq.s32.totalorder %v146, 1
    %151 = vst [vmem:[#allocation1] ss:$2 sm:$0xff] %v143
    %s152 = scalar_lea.vmem [#allocation1], 16
    %153 = vst [vmem:[%s152] ss:$2 sm:$0xff] %v144
    %v154 = vld.sshfl [vmem:[#allocation1] sm:$0xff pattern:$0x75316420]
    %v155 = vld.sshfl [vmem:[#allocation1 + $0x8] sm:$0xff pattern:$0x75316420]
    %v156 = vld.sshfl [vmem:[#allocation1 + $0x10] sm:$0xff pattern:$0x75316420]
    %157 = vrot.lane.b32.xlu0 %v154, 126
    %v158 = vpop.permute.xlu0 %157
    %159 = vrot.lane.b32.xlu0 %v155, 126
    %v160 = vpop.permute.xlu0 %159
    %161 = vrot.lane.b32.xlu0 %v156, 126
    %v162 = vpop.permute.xlu0 %161
    %vm163 = vcmask 1031168
    %v164 = vsel %vm163, %v158, %v160
    %v165 = vsel %vm163, %v160, %v162
    %v168 = vsel %vm147, %v164, 0.0
    %v169 = vsel %vm148, %v165, 0.0
    %170 = vst [vmem:[#allocation3 + $0x10] sm:$0xf] %v168
    %171 = vst [vmem:[#allocation3 + $0x18] sm:$0xf] %v169
    %v172 = vld [vmem:[#allocation2] sm:$0xff]
    %v173 = vld [vmem:[#allocation2 + $0x8] sm:$0xf]
    %176 = vst [vmem:[#allocation1] ss:$2 sm:$0xff] %v172
    %s177 = scalar_lea.vmem [#allocation1], 16
    %178 = vst [vmem:[%s177] ss:$2 sm:$0xff] %v173
    %v179 = vld.sshfl [vmem:[#allocation1] sm:$0xff pattern:$0x75316420]
    %v180 = vld.sshfl [vmem:[#allocation1 + $0x8] sm:$0xff pattern:$0x75316420]
    %v181 = vld.sshfl [vmem:[#allocation1 + $0x10] sm:$0xff pattern:$0x75316420]
    %182 = vrot.lane.b32.xlu0 %v179, 112
    %v183 = vpop.permute.xlu0 %182
    %184 = vrot.lane.b32.xlu0 %v180, 112
    %v185 = vpop.permute.xlu0 %184
    %186 = vrot.lane.b32.xlu0 %v181, 112
    %v187 = vpop.permute.xlu0 %186
    %vm188 = vcmask 916480
    %v189 = vsel %vm188, %v183, %v185
    %v190 = vsel %vm188, %v185, %v187
    %v193 = vsel %vm107, %v189, 0.0
    %v194 = vsel %vm108, %v190, 0.0
    %v197 = vrot.slane %v193, 4
    %v198 = vrot.slane %v194, 4
    %201 = vst [vmem:[#allocation3 + $0x10] sm:$0xf0] %v197
    %202 = vst [vmem:[#allocation3 + $0x18] sm:$0xf0] %v198
    %v203 = vld [vmem:[#allocation2] sm:$0xff]
    %v204 = vld [vmem:[#allocation2 + $0x8] sm:$0xf]
    %207 = vst [vmem:[#allocation1] ss:$2 sm:$0xff] %v203
    %s208 = scalar_lea.vmem [#allocation1], 16
    %209 = vst [vmem:[%s208] ss:$2 sm:$0xff] %v204
    %v210 = vld.sshfl [vmem:[#allocation1] sm:$0xff pattern:$0x75316420]
    %v211 = vld.sshfl [vmem:[#allocation1 + $0x8] sm:$0xff pattern:$0x75316420]
    %v212 = vld.sshfl [vmem:[#allocation1 + $0x10] sm:$0xff pattern:$0x75316420]
    %213 = vrot.lane.b32.xlu0 %v210, 111
    %v214 = vpop.permute.xlu0 %213
    %215 = vrot.lane.b32.xlu0 %v211, 111
    %v216 = vpop.permute.xlu0 %215
    %217 = vrot.lane.b32.xlu0 %v212, 111
    %v218 = vpop.permute.xlu0 %217
    %vm219 = vcmask 908288
    %v220 = vsel %vm219, %v214, %v216
    %v221 = vsel %vm219, %v216, %v218
    %224 = vst [vmem:[#allocation3 + $0x20] sm:$0xf] %v220
    %225 = vst [vmem:[#allocation3 + $0x28] sm:$0xf] %v221
    %v226 = vld [vmem:[#allocation2] sm:$0xff]
    %v227 = vld [vmem:[#allocation2 + $0x8] sm:$0xf]
    %230 = vst [vmem:[#allocation1] ss:$2 sm:$0xff] %v226
    %s231 = scalar_lea.vmem [#allocation1], 16
    %232 = vst [vmem:[%s231] ss:$2 sm:$0xff] %v227
    %v233 = vld.sshfl [vmem:[#allocation1] sm:$0xff pattern:$0x75316420]
    %v234 = vld.sshfl [vmem:[#allocation1 + $0x8] sm:$0xff pattern:$0x75316420]
    %v235 = vld.sshfl [vmem:[#allocation1 + $0x10] sm:$0xff pattern:$0x75316420]
    %236 = vrot.lane.b32.xlu0 %v233, 110
    %v237 = vpop.permute.xlu0 %236
    %238 = vrot.lane.b32.xlu0 %v234, 110
    %v239 = vpop.permute.xlu0 %238
    %240 = vrot.lane.b32.xlu0 %v235, 110
    %v241 = vpop.permute.xlu0 %240
    %vm242 = vcmask 900096
    %v243 = vsel %vm242, %v237, %v239
    %v244 = vsel %vm242, %v239, %v241
    %v247 = vsel %vm147, %v243, 0.0
    %v248 = vsel %vm148, %v244, 0.0
    %v251 = vrot.slane %v247, 4
    %v252 = vrot.slane %v248, 4
    %255 = vst [vmem:[#allocation3 + $0x20] sm:$0xf0] %v251
    %256 = vst [vmem:[#allocation3 + $0x28] sm:$0xf0] %v252
    %v257 = vld [vmem:[#allocation2] sm:$0xff]
    %v258 = vld [vmem:[#allocation2 + $0x8] sm:$0xf]
    %261 = vst [vmem:[#allocation1] ss:$2 sm:$0xff] %v257
    %s262 = scalar_lea.vmem [#allocation1], 16
    %263 = vst [vmem:[%s262] ss:$2 sm:$0xff] %v258
    %v264 = vld.sshfl [vmem:[#allocation1] sm:$0xff pattern:$0x75316420]
    %v265 = vld.sshfl [vmem:[#allocation1 + $0x8] sm:$0xff pattern:$0x75316420]
    %v266 = vld.sshfl [vmem:[#allocation1 + $0x10] sm:$0xff pattern:$0x75316420]
    %267 = vrot.lane.b32.xlu0 %v264, 96
    %v268 = vpop.permute.xlu0 %267
    %269 = vrot.lane.b32.xlu0 %v265, 96
    %v270 = vpop.permute.xlu0 %269
    %271 = vrot.lane.b32.xlu0 %v266, 96
    %v272 = vpop.permute.xlu0 %271
    %vm273 = vcmask 785408
    %v274 = vsel %vm273, %v268, %v270
    %v275 = vsel %vm273, %v270, %v272
    %v278 = vsel %vm107, %v274, 0.0
    %v279 = vsel %vm108, %v275, 0.0
    %280 = vst [vmem:[#allocation3 + $0x30] sm:$0xf] %v278
    %281 = vst [vmem:[#allocation3 + $0x38] sm:$0xf] %v279
    %v282 = vld [vmem:[#allocation2] sm:$0xff]
    %v283 = vld [vmem:[#allocation2 + $0x8] sm:$0xf]
    %s286 = scalar_lea.vmem [#allocation1], 1
    %287 = vst [vmem:[%s286] ss:$2 sm:$0xff] %v282
    %s288 = scalar_lea.vmem [#allocation1], 17
    %289 = vst [vmem:[%s288] ss:$2 sm:$0xff] %v283
    %v290 = vld.sshfl [vmem:[#allocation1] sm:$0xff pattern:$0x75316420]
    %v291 = vld.sshfl [vmem:[#allocation1 + $0x8] sm:$0xff pattern:$0x75316420]
    %v292 = vld.sshfl [vmem:[#allocation1 + $0x10] sm:$0xff pattern:$0x75316420]
    %293 = vrot.lane.b32.xlu0 %v290, 95
    %v294 = vpop.permute.xlu0 %293
    %295 = vrot.lane.b32.xlu0 %v291, 95
    %v296 = vpop.permute.xlu0 %295
    %297 = vrot.lane.b32.xlu0 %v292, 95
    %v298 = vpop.permute.xlu0 %297
    %vm299 = vcmask 777216
    %v300 = vsel %vm299, %v294, %v296
    %v301 = vsel %vm299, %v296, %v298
    %304 = vst [vmem:[#allocation3 + $0x30] sm:$0xf0] %v300
    %305 = vst [vmem:[#allocation3 + $0x38] sm:$0xf0] %v301
    %v306 = vld [vmem:[#allocation2] sm:$0xff]
    %v307 = vld [vmem:[#allocation2 + $0x8] sm:$0xf]
    %310 = vst [vmem:[#allocation1] ss:$2 sm:$0xff] %v306
    %s311 = scalar_lea.vmem [#allocation1], 16
    %312 = vst [vmem:[%s311] ss:$2 sm:$0xff] %v307
    %v313 = vld.sshfl [vmem:[#allocation1] sm:$0xff pattern:$0x75316420]
    %v314 = vld.sshfl [vmem:[#allocation1 + $0x8] sm:$0xff pattern:$0x75316420]
    %v315 = vld.sshfl [vmem:[#allocation1 + $0x10] sm:$0xff pattern:$0x75316420]
    %316 = vrot.lane.b32.xlu0 %v313, 94
    %v317 = vpop.permute.xlu0 %316
    %318 = vrot.lane.b32.xlu0 %v314, 94
    %v319 = vpop.permute.xlu0 %318
    %320 = vrot.lane.b32.xlu0 %v315, 94
    %v321 = vpop.permute.xlu0 %320
    %vm322 = vcmask 769024
    %v323 = vsel %vm322, %v317, %v319
    %v324 = vsel %vm322, %v319, %v321
    %v327 = vsel %vm147, %v323, 0.0
    %v328 = vsel %vm148, %v324, 0.0
    %329 = vst [vmem:[#allocation3 + $0x40] sm:$0xf] %v327
    %330 = vst [vmem:[#allocation3 + $0x48] sm:$0xf] %v328
    %v331 = vld [vmem:[#allocation3] sm:$0xff]
    %v332 = vld [vmem:[#allocation3 + $0x8] sm:$0xff]
    %v333 = vld [vmem:[#allocation3 + $0x10] sm:$0xff]
    %v334 = vld [vmem:[#allocation3 + $0x18] sm:$0xff]
    %v335 = vld [vmem:[#allocation3 + $0x20] sm:$0xff]
    %v336 = vld [vmem:[#allocation3 + $0x28] sm:$0xff]
    %v337 = vld [vmem:[#allocation3 + $0x30] sm:$0xff]
    %v338 = vld [vmem:[#allocation3 + $0x38] sm:$0xff]
    %v339 = vld [vmem:[#allocation3 + $0x40] sm:$0xf]
    %v340 = vld [vmem:[#allocation3 + $0x48] sm:$0xf]
    %vm341 = vcmask 293888
    %v343 = vsel %vm341, %v88, 0
    %vm345 = vcmask 1043456
    %v347 = vsel %vm345, %v339, 0
    %v350 = vsel %vm345, %v340, 0
    %352 = vmatpush.msra.mxu0 0.0
    %353 = vmatpush.msra.mxu0 0.0
    %354 = vmatpush.msra.mxu0 0.0
    %355 = vmatpush.msra.mxu0 0.0
    %356 = vmatpush.msra.mxu0 0.0
    %357 = vmatpush.msra.mxu0 0.0
    %358 = vmatpush.msra.mxu0 0.0
    %359 = vmatpush.msra.mxu0 0.0
    %360 = vmatpush.msra.mxu0 0.0
    %361 = vmatpush.msra.mxu0 0.0
    %362 = vmatpush.msra.mxu0 0.0
    %363 = vmatpush.msra.mxu0 %v347
    %364 = vmatpush.msra.mxu0 %v337
    %365 = vmatpush.msra.mxu0 %v335
    %366 = vmatpush.msra.mxu0 %v333
    %367 = vmatpush.msra.mxu0 %v331
    %368 = vmatmul.f32.gmra.mxu0 %v343
    %v369 = vpop.f32.mrf.mxu0
    %v370 = vadd.f32 0.0, %v369
    %371 = vdwg.mxu0
    %372 = vmatpush.msra.mxu0 0.0
    %373 = vmatpush.msra.mxu0 0.0
    %374 = vmatpush.msra.mxu0 0.0
    %375 = vmatpush.msra.mxu0 0.0
    %376 = vmatpush.msra.mxu0 0.0
    %377 = vmatpush.msra.mxu0 0.0
    %378 = vmatpush.msra.mxu0 0.0
    %379 = vmatpush.msra.mxu0 0.0
    %380 = vmatpush.msra.mxu0 0.0
    %381 = vmatpush.msra.mxu0 0.0
    %382 = vmatpush.msra.mxu0 0.0
    %383 = vmatpush.msra.mxu0 %v350
    %384 = vmatpush.msra.mxu0 %v338
    %385 = vmatpush.msra.mxu0 %v336
    %386 = vmatpush.msra.mxu0 %v334
    %387 = vmatpush.msra.mxu0 %v332
    %388 = vmatmul.f32.gmra.mxu0 %v343
    %v389 = vpop.f32.mrf.mxu0
    %v390 = vadd.f32 0.0, %v389
    %391 = vdwg.mxu0
    %v392 = vmax.f32 %v370, 0.0
    %v393 = vmax.f32 %v390, 0.0
    %394 = vst [vmem:[#allocation9] sm:$0xff] %v392
    %395 = vst [vmem:[#allocation9 + $0x8] sm:$0xff] %v393
    %s396 = scalar_lea.vmem [#allocation4], 8
    %v397 = vld [vmem:[%s396] sm:$0xff]
    %399 = vrot.lane.b32.xlu0 %v397, 17
    %v400 = vpop.permute.xlu0 %399
    %v401 = vrot.slane %v400, 4
    %v402 = vsel %vm94, %v401, %v400
    %405 = vst.msk [vmem:[#allocation2] sm:$0xff] %vm100, %v402
    %406 = vst.msk [vmem:[#allocation2 + $0x8] sm:$0xf] %vm102, %v401
    %v407 = vld [vmem:[#allocation2] sm:$0xff]
    %409 = vst [vmem:[#allocation1] ss:$2 sm:$0xff] %v407
    %v410 = vld.sshfl [vmem:[#allocation1] sm:$0xff pattern:$0x75316420]
    %v411 = vld.sshfl [vmem:[#allocation1 + $0x8] sm:$0xff pattern:$0x75316420]
    %v414 = vsel %vm107, %v410, 0.0
    %v415 = vsel %vm108, %v411, 0.0
    %416 = vst [vmem:[#allocation3] sm:$0xf] %v414
    %417 = vst [vmem:[#allocation3 + $0x8] sm:$0xf] %v415
    %v418 = vld [vmem:[#allocation2] sm:$0xff]
    %v419 = vld [vmem:[#allocation2 + $0x8] sm:$0xf]
    %s422 = scalar_lea.vmem [#allocation1], 1
    %423 = vst [vmem:[%s422] ss:$2 sm:$0xff] %v418
    %s424 = scalar_lea.vmem [#allocation1], 17
    %425 = vst [vmem:[%s424] ss:$2 sm:$0xff] %v419
    %v426 = vld.sshfl [vmem:[#allocation1] sm:$0xff pattern:$0x75316420]
    %v427 = vld.sshfl [vmem:[#allocation1 + $0x8] sm:$0xff pattern:$0x75316420]
    %v428 = vld.sshfl [vmem:[#allocation1 + $0x10] sm:$0xff pattern:$0x75316420]
    %429 = vrot.lane.b32.xlu0 %v426, 127
    %v430 = vpop.permute.xlu0 %429
    %431 = vrot.lane.b32.xlu0 %v427, 127
    %v432 = vpop.permute.xlu0 %431
    %433 = vrot.lane.b32.xlu0 %v428, 127
    %v434 = vpop.permute.xlu0 %433
    %v435 = vsel %vm136, %v430, %v432
    %v436 = vsel %vm136, %v432, %v434
    %439 = vst [vmem:[#allocation3] sm:$0xf0] %v435
    %440 = vst [vmem:[#allocation3 + $0x8] sm:$0xf0] %v436
    %v441 = vld [vmem:[#allocation2] sm:$0xff]
    %v442 = vld [vmem:[#allocation2 + $0x8] sm:$0xf]
    %445 = vst [vmem:[#allocation1] ss:$2 sm:$0xff] %v441
    %s446 = scalar_lea.vmem [#allocation1], 16
    %447 = vst [vmem:[%s446] ss:$2 sm:$0xff] %v442
    %v448 = vld.sshfl [vmem:[#allocation1] sm:$0xff pattern:$0x75316420]
    %v449 = vld.sshfl [vmem:[#allocation1 + $0x8] sm:$0xff pattern:$0x75316420]
    %v450 = vld.sshfl [vmem:[#allocation1 + $0x10] sm:$0xff pattern:$0x75316420]
    %451 = vrot.lane.b32.xlu0 %v448, 126
    %v452 = vpop.permute.xlu0 %451
    %453 = vrot.lane.b32.xlu0 %v449, 126
    %v454 = vpop.permute.xlu0 %453
    %455 = vrot.lane.b32.xlu0 %v450, 126
    %v456 = vpop.permute.xlu0 %455
    %v457 = vsel %vm163, %v452, %v454
    %v458 = vsel %vm163, %v454, %v456
    %v461 = vsel %vm147, %v457, 0.0
    %v462 = vsel %vm148, %v458, 0.0
    %463 = vst [vmem:[#allocation3 + $0x10] sm:$0xf] %v461
    %464 = vst [vmem:[#allocation3 + $0x18] sm:$0xf] %v462
    %v465 = vld [vmem:[#allocation2] sm:$0xff]
    %v466 = vld [vmem:[#allocation2 + $0x8] sm:$0xf]
    %469 = vst [vmem:[#allocation1] ss:$2 sm:$0xff] %v465
    %s470 = scalar_lea.vmem [#allocation1], 16
    %471 = vst [vmem:[%s470] ss:$2 sm:$0xff] %v466
    %v472 = vld.sshfl [vmem:[#allocation1] sm:$0xff pattern:$0x75316420]
    %v473 = vld.sshfl [vmem:[#allocation1 + $0x8] sm:$0xff pattern:$0x75316420]
    %v474 = vld.sshfl [vmem:[#allocation1 + $0x10] sm:$0xff pattern:$0x75316420]
    %475 = vrot.lane.b32.xlu0 %v472, 112
    %v476 = vpop.permute.xlu0 %475
    %477 = vrot.lane.b32.xlu0 %v473, 112
    %v478 = vpop.permute.xlu0 %477
    %479 = vrot.lane.b32.xlu0 %v474, 112
    %v480 = vpop.permute.xlu0 %479
    %v481 = vsel %vm188, %v476, %v478
    %v482 = vsel %vm188, %v478, %v480
    %v485 = vsel %vm107, %v481, 0.0
    %v486 = vsel %vm108, %v482, 0.0
    %v489 = vrot.slane %v485, 4
    %v490 = vrot.slane %v486, 4
    %493 = vst [vmem:[#allocation3 + $0x10] sm:$0xf0] %v489
    %494 = vst [vmem:[#allocation3 + $0x18] sm:$0xf0] %v490
    %v495 = vld [vmem:[#allocation2] sm:$0xff]
    %v496 = vld [vmem:[#allocation2 + $0x8] sm:$0xf]
    %499 = vst [vmem:[#allocation1] ss:$2 sm:$0xff] %v495
    %s500 = scalar_lea.vmem [#allocation1], 16
    %501 = vst [vmem:[%s500] ss:$2 sm:$0xff] %v496
    %v502 = vld.sshfl [vmem:[#allocation1] sm:$0xff pattern:$0x75316420]
    %v503 = vld.sshfl [vmem:[#allocation1 + $0x8] sm:$0xff pattern:$0x75316420]
    %v504 = vld.sshfl [vmem:[#allocation1 + $0x10] sm:$0xff pattern:$0x75316420]
    %505 = vrot.lane.b32.xlu0 %v502, 111
    %v506 = vpop.permute.xlu0 %505
    %507 = vrot.lane.b32.xlu0 %v503, 111
    %v508 = vpop.permute.xlu0 %507
    %509 = vrot.lane.b32.xlu0 %v504, 111
    %v510 = vpop.permute.xlu0 %509
    %v511 = vsel %vm219, %v506, %v508
    %v512 = vsel %vm219, %v508, %v510
    %515 = vst [vmem:[#allocation3 + $0x20] sm:$0xf] %v511
    %516 = vst [vmem:[#allocation3 + $0x28] sm:$0xf] %v512
    %v517 = vld [vmem:[#allocation2] sm:$0xff]
    %v518 = vld [vmem:[#allocation2 + $0x8] sm:$0xf]
    %521 = vst [vmem:[#allocation1] ss:$2 sm:$0xff] %v517
    %s522 = scalar_lea.vmem [#allocation1], 16
    %523 = vst [vmem:[%s522] ss:$2 sm:$0xff] %v518
    %v524 = vld.sshfl [vmem:[#allocation1] sm:$0xff pattern:$0x75316420]
    %v525 = vld.sshfl [vmem:[#allocation1 + $0x8] sm:$0xff pattern:$0x75316420]
    %v526 = vld.sshfl [vmem:[#allocation1 + $0x10] sm:$0xff pattern:$0x75316420]
    %527 = vrot.lane.b32.xlu0 %v524, 110
    %v528 = vpop.permute.xlu0 %527
    %529 = vrot.lane.b32.xlu0 %v525, 110
    %v530 = vpop.permute.xlu0 %529
    %531 = vrot.lane.b32.xlu0 %v526, 110
    %v532 = vpop.permute.xlu0 %531
    %v533 = vsel %vm242, %v528, %v530
    %v534 = vsel %vm242, %v530, %v532
    %v537 = vsel %vm147, %v533, 0.0
    %v538 = vsel %vm148, %v534, 0.0
    %v541 = vrot.slane %v537, 4
    %v542 = vrot.slane %v538, 4
    %545 = vst [vmem:[#allocation3 + $0x20] sm:$0xf0] %v541
    %546 = vst [vmem:[#allocation3 + $0x28] sm:$0xf0] %v542
    %v547 = vld [vmem:[#allocation2] sm:$0xff]
    %v548 = vld [vmem:[#allocation2 + $0x8] sm:$0xf]
    %551 = vst [vmem:[#allocation1] ss:$2 sm:$0xff] %v547
    %s552 = scalar_lea.vmem [#allocation1], 16
    %553 = vst [vmem:[%s552] ss:$2 sm:$0xff] %v548
    %v554 = vld.sshfl [vmem:[#allocation1] sm:$0xff pattern:$0x75316420]
    %v555 = vld.sshfl [vmem:[#allocation1 + $0x8] sm:$0xff pattern:$0x75316420]
    %v556 = vld.sshfl [vmem:[#allocation1 + $0x10] sm:$0xff pattern:$0x75316420]
    %557 = vrot.lane.b32.xlu0 %v554, 96
    %v558 = vpop.permute.xlu0 %557
    %559 = vrot.lane.b32.xlu0 %v555, 96
    %v560 = vpop.permute.xlu0 %559
    %561 = vrot.lane.b32.xlu0 %v556, 96
    %v562 = vpop.permute.xlu0 %561
    %v563 = vsel %vm273, %v558, %v560
    %v564 = vsel %vm273, %v560, %v562
    %v567 = vsel %vm107, %v563, 0.0
    %v568 = vsel %vm108, %v564, 0.0
    %569 = vst [vmem:[#allocation3 + $0x30] sm:$0xf] %v567
    %570 = vst [vmem:[#allocation3 + $0x38] sm:$0xf] %v568
    %v571 = vld [vmem:[#allocation2] sm:$0xff]
    %v572 = vld [vmem:[#allocation2 + $0x8] sm:$0xf]
    %s575 = scalar_lea.vmem [#allocation1], 1
    %576 = vst [vmem:[%s575] ss:$2 sm:$0xff] %v571
    %s577 = scalar_lea.vmem [#allocation1], 17
    %578 = vst [vmem:[%s577] ss:$2 sm:$0xff] %v572
    %v579 = vld.sshfl [vmem:[#allocation1] sm:$0xff pattern:$0x75316420]
    %v580 = vld.sshfl [vmem:[#allocation1 + $0x8] sm:$0xff pattern:$0x75316420]
    %v581 = vld.sshfl [vmem:[#allocation1 + $0x10] sm:$0xff pattern:$0x75316420]
    %582 = vrot.lane.b32.xlu0 %v579, 95
    %v583 = vpop.permute.xlu0 %582
    %584 = vrot.lane.b32.xlu0 %v580, 95
    %v585 = vpop.permute.xlu0 %584
    %586 = vrot.lane.b32.xlu0 %v581, 95
    %v587 = vpop.permute.xlu0 %586
    %v588 = vsel %vm299, %v583, %v585
    %v589 = vsel %vm299, %v585, %v587
    %592 = vst [vmem:[#allocation3 + $0x30] sm:$0xf0] %v588
    %593 = vst [vmem:[#allocation3 + $0x38] sm:$0xf0] %v589
    %v594 = vld [vmem:[#allocation2] sm:$0xff]
    %v595 = vld [vmem:[#allocation2 + $0x8] sm:$0xf]
    %598 = vst [vmem:[#allocation1] ss:$2 sm:$0xff] %v594
    %s599 = scalar_lea.vmem [#allocation1], 16
    %600 = vst [vmem:[%s599] ss:$2 sm:$0xff] %v595
    %v601 = vld.sshfl [vmem:[#allocation1] sm:$0xff pattern:$0x75316420]
    %v602 = vld.sshfl [vmem:[#allocation1 + $0x8] sm:$0xff pattern:$0x75316420]
    %v603 = vld.sshfl [vmem:[#allocation1 + $0x10] sm:$0xff pattern:$0x75316420]
    %604 = vrot.lane.b32.xlu0 %v601, 94
    %v605 = vpop.permute.xlu0 %604
    %606 = vrot.lane.b32.xlu0 %v602, 94
    %v607 = vpop.permute.xlu0 %606
    %608 = vrot.lane.b32.xlu0 %v603, 94
    %v609 = vpop.permute.xlu0 %608
    %v610 = vsel %vm322, %v605, %v607
    %v611 = vsel %vm322, %v607, %v609
    %v614 = vsel %vm147, %v610, 0.0
    %v615 = vsel %vm148, %v611, 0.0
    %616 = vst [vmem:[#allocation3 + $0x40] sm:$0xf] %v614
    %617 = vst [vmem:[#allocation3 + $0x48] sm:$0xf] %v615
    %v618 = vld [vmem:[#allocation3] sm:$0xff]
    %v619 = vld [vmem:[#allocation3 + $0x8] sm:$0xff]
    %v620 = vld [vmem:[#allocation3 + $0x10] sm:$0xff]
    %v621 = vld [vmem:[#allocation3 + $0x18] sm:$0xff]
    %v622 = vld [vmem:[#allocation3 + $0x20] sm:$0xff]
    %v623 = vld [vmem:[#allocation3 + $0x28] sm:$0xff]
    %v624 = vld [vmem:[#allocation3 + $0x30] sm:$0xff]
    %v625 = vld [vmem:[#allocation3 + $0x38] sm:$0xff]
    %v626 = vld [vmem:[#allocation3 + $0x40] sm:$0xf]
    %v627 = vld [vmem:[#allocation3 + $0x48] sm:$0xf]
    %v629 = vsel %vm345, %v626, 0
    %v632 = vsel %vm345, %v627, 0
    %634 = vmatpush.msra.mxu0 0.0
    %635 = vmatpush.msra.mxu0 0.0
    %636 = vmatpush.msra.mxu0 0.0
    %637 = vmatpush.msra.mxu0 0.0
    %638 = vmatpush.msra.mxu0 0.0
    %639 = vmatpush.msra.mxu0 0.0
    %640 = vmatpush.msra.mxu0 0.0
    %641 = vmatpush.msra.mxu0 0.0
    %642 = vmatpush.msra.mxu0 0.0
    %643 = vmatpush.msra.mxu0 0.0
    %644 = vmatpush.msra.mxu0 0.0
    %645 = vmatpush.msra.mxu0 %v629
    %646 = vmatpush.msra.mxu0 %v624
    %647 = vmatpush.msra.mxu0 %v622
    %648 = vmatpush.msra.mxu0 %v620
    %649 = vmatpush.msra.mxu0 %v618
    %650 = vmatmul.f32.gmra.mxu0 %v343
    %v651 = vpop.f32.mrf.mxu0
    %v652 = vadd.f32 0.0, %v651
    %653 = vdwg.mxu0
    %654 = vmatpush.msra.mxu0 0.0
    %655 = vmatpush.msra.mxu0 0.0
    %656 = vmatpush.msra.mxu0 0.0
    %657 = vmatpush.msra.mxu0 0.0
    %658 = vmatpush.msra.mxu0 0.0
    %659 = vmatpush.msra.mxu0 0.0
    %660 = vmatpush.msra.mxu0 0.0
    %661 = vmatpush.msra.mxu0 0.0
    %662 = vmatpush.msra.mxu0 0.0
    %663 = vmatpush.msra.mxu0 0.0
    %664 = vmatpush.msra.mxu0 0.0
    %665 = vmatpush.msra.mxu0 %v632
    %666 = vmatpush.msra.mxu0 %v625
    %667 = vmatpush.msra.mxu0 %v623
    %668 = vmatpush.msra.mxu0 %v621
    %669 = vmatpush.msra.mxu0 %v619
    %670 = vmatmul.f32.gmra.mxu0 %v343
    %v671 = vpop.f32.mrf.mxu0
    %v672 = vadd.f32 0.0, %v671
    %673 = vdwg.mxu0
    %v674 = vmax.f32 %v652, 0.0
    %v675 = vmax.f32 %v672, 0.0
    %s676 = scalar_lea.vmem [#allocation9], 16
    %677 = vst [vmem:[%s676] sm:$0xff] %v674
    %678 = vst [vmem:[%s676 + $0x8] sm:$0xff] %v675
    // Predicated region
    $region18: #{tpu_custom_call.1} parent=1 // pred_check
      _
    $region19: #{tpu_custom_call.1} parent=1 // pred_check_branch
      %680 = sbr.rel (0) target = $region21
    $region20: #{tpu_custom_call.1} parent=1 // pred_region
      %682 = vsyncadd [#allocation6], 0
      %s683 = sshll.u32 [#allocation9], 4
      %s684 = int_to_ptr.vmem [resolvable:$true] %s683
      %s685 = sshll.u32 %s2, 4
      %s686 = int_to_ptr.hbm [resolvable:$true] %s685
      %691 = dma.vmem_to_hbm [thread:$0]  %s684, 512, %s686, [#allocation6], 256, 256, 16
    $region21: #{tpu_custom_call.1} parent=1 // pred_fallthru
      _
    // Predicated region
    $region22: #{tpu_custom_call.1} parent=1 // pred_check
      _
    $region23: #{tpu_custom_call.1} parent=1 // pred_check_branch
      %693 = sbr.rel (0) target = $region25
    $region24: #{tpu_custom_call.1} parent=1 // pred_region
      %695 = dma.done [#allocation6], 512
    $region25: #{tpu_custom_call.1} parent=1 // pred_fallthru
      _
    %696 = vsyncpa [#allocation5], 1
    %697 = vsyncpa [#allocation8], 1
    %698 = vsyncpa [#allocation6], 1

</llo_original>
